<compile_context>
chip_gen: v7x
topology: tpu7x:2x2x1
jax: 0.10.0
libtpu: 0.0.40
codegen_flags: <defaults>
</compile_context>

<pallas_src>
import jax
import jax.numpy as jnp
from jax.experimental import pallas as pl
from jax.experimental.pallas import tpu as pltpu

EPS = 1e-5  # nn.BatchNorm2d default eps


def _sum_over_leading(t):
    """Sum a (N, H, W) value over its leading axis with a static unroll.

    Leading-dim integer indexing + elementwise adds only -> trivially lowerable
    (avoids relying on reductions over untiled dims)."""
    s = t[0]
    for n in range(1, t.shape[0]):
        s = s + t[n]
    return s


def bn_relu_linear_kernel(x_ref, gamma_ref, beta_ref, w_ref, b_ref, o_ref):
    # x_ref     : (N, C, H, W)  full input (single invocation, whole array in VMEM)
    # gamma_ref : (C,) in SMEM  BatchNorm weight (per-channel scalar)
    # beta_ref  : (C,) in SMEM  BatchNorm bias
    # w_ref     : (W, OUT)      Linear weight, transposed (in x out)
    # b_ref     : (1, OUT)      Linear bias
    # o_ref     : (N, C, H, OUT)
    N, C, H, W = x_ref.shape
    inv_count = 1.0 / (N * H * W)

    # Static unroll over the (tiny) channel axis: all work lives in one
    # kernel invocation, no grid steps.
    for c in range(C):
        xc = x_ref[:, c, :, :].astype(jnp.float32)          # (N, H, W)

        # BatchNorm2d training-mode stats over (N, H, W) for this channel.
        mu = jnp.sum(_sum_over_leading(xc)) * inv_count      # scalar
        d = xc - mu
        var = jnp.sum(_sum_over_leading(d * d)) * inv_count  # biased variance
        inv = jax.lax.rsqrt(var + EPS)

        # Fold BN affine into one FMA per element: x*scale + shift.
        scale = gamma_ref[c] * inv                           # scalar (SMEM read)
        shift = beta_ref[c] - mu * scale
        xr = jnp.maximum(xc * scale + shift, 0.0)            # BN + ReLU, (N,H,W)

        # Linear(W -> OUT), W == 2: two broadcast FMAs on the VPU instead of
        # an MXU dot (the 8x2x4 contraction would be pure MXU padding).
        acc = xr[..., 0:1] * w_ref[0:1, :]                   # (N,H,1)*(1,OUT)->(N,H,OUT)
        for k in range(1, W):
            acc = acc + xr[..., k:k + 1] * w_ref[k:k + 1, :]
        o_ref[:, c, :, :] = (acc + b_ref[...]).astype(o_ref.dtype)


def model_forward(x_nchw, gamma, beta, w_lin_t, b_lin):
    """x_nchw: (N, C, H, W) float32. Returns (N, 2, 3*C, H, OUT)."""
    N, C, H, W = x_nchw.shape
    OUT = w_lin_t.shape[1]

    y = pl.pallas_call(
        bn_relu_linear_kernel,
        out_shape=jax.ShapeDtypeStruct((N, C, H, OUT), jnp.float32),
        in_specs=[
            pl.BlockSpec(memory_space=pltpu.MemorySpace.VMEM),  # x, full NCHW array
            pl.BlockSpec(memory_space=pltpu.MemorySpace.SMEM),  # gamma (C,)
            pl.BlockSpec(memory_space=pltpu.MemorySpace.SMEM),  # beta  (C,)
            pl.BlockSpec(memory_space=pltpu.MemorySpace.VMEM),  # Linear weight^T (W, OUT)
            pl.BlockSpec(memory_space=pltpu.MemorySpace.VMEM),  # Linear bias (1, OUT)
        ],
        out_specs=pl.BlockSpec(memory_space=pltpu.MemorySpace.VMEM),
    )(x_nchw, gamma, beta, w_lin_t, b_lin.reshape(1, OUT))

    # torch.stack([y]*2, dim=1) then torch.cat((z,z,z), dim=2) of identical
    # copies is pure replication -> express it as a single broadcast instead
    # of materializing 6 separate copies.
    z = jnp.broadcast_to(y[:, None, None, :, :, :], (N, 2, 3, C, H, OUT))
    return z.reshape(N, 2, 3 * C, H, OUT)


def reference(x, gamma, beta, w_t, b):
    """Pure-JAX reference matching PyTorch training-mode forward."""
    mu = x.mean(axis=(0, 2, 3), keepdims=True)
    var = ((x - mu) ** 2).mean(axis=(0, 2, 3), keepdims=True)
    g = gamma.reshape(1, -1, 1, 1)
    bb = beta.reshape(1, -1, 1, 1)
    xn = (x - mu) * jax.lax.rsqrt(var + EPS) * g + bb
    xr = jnp.maximum(xn, 0.0)
    y = jnp.einsum("nchw,wo->ncho", xr, w_t) + b
    z = jnp.stack([y, y], axis=1)
    return jnp.concatenate([z, z, z], axis=2)


if __name__ == "__main__":
    N, C, H, W, OUT = 2, 2, 4, 2, 4

    key = jax.random.PRNGKey(0)
    k1, k2, k3, k4, k5 = jax.random.split(key, 5)

    x = jax.random.normal(k1, (N, C, H, W), dtype=jnp.float32)

    # Deterministic parameter init (BN affine ~ default 1/0 with small jitter;
    # Linear ~ PyTorch-style uniform(-1/sqrt(fan_in), 1/sqrt(fan_in))).
    gamma = jnp.ones((C,), jnp.float32) + 0.1 * jax.random.normal(k2, (C,), jnp.float32)
    beta = 0.1 * jax.random.normal(k3, (C,), jnp.float32)
    bound = 1.0 / (W ** 0.5)
    w_lin_t = jax.random.uniform(k4, (W, OUT), jnp.float32, -bound, bound)  # (in=2, out=4)
    b_lin = jax.random.uniform(k5, (OUT,), jnp.float32, -bound, bound)

    out = model_forward(x, gamma, beta, w_lin_t, b_lin)
    out = jax.block_until_ready(out)

    ref = reference(x, gamma, beta, w_lin_t, b_lin)
    assert out.shape == (N, 2, 3 * C, H, OUT), out.shape
    assert jnp.allclose(out, ref, atol=1e-5, rtol=1e-5), float(jnp.max(jnp.abs(out - ref)))
    print("KERNEL_OK")
</pallas_src>

<mosaic_0001>
module attributes {stable_mosaic.version = 11 : i64} {
  func.func @bn_relu_linear_kernel(%arg0: memref<2x2x4x2xf32, #tpu.memory_space<vmem>>, %arg1: memref<2xf32, #tpu.memory_space<smem>>, %arg2: memref<2xf32, #tpu.memory_space<smem>>, %arg3: memref<2x4xf32, #tpu.memory_space<vmem>>, %arg4: memref<1x4xf32, #tpu.memory_space<vmem>>, %arg5: memref<2x2x4x4xf32, #tpu.memory_space<vmem>>) attributes {dimension_semantics = [], scalar_prefetch = 0 : i64, scratch_operands = 0 : i64, tpu.core_type = #tpu.core_type<tc>} {
    %c0 = arith.constant 0 : index
    %c0_0 = arith.constant 0 : index
    %c0_1 = arith.constant 0 : index
    %c0_2 = arith.constant 0 : index
    %0 = vector.load %arg0[%c0, %c0_0, %c0_1, %c0_2] : memref<2x2x4x2xf32, #tpu.memory_space<vmem>>, vector<2x1x4x2xf32>
    %1 = vector.shape_cast %0 : vector<2x1x4x2xf32> to vector<2x4x2xf32>
    %2 = vector.extract_strided_slice %1 {offsets = [0, 0, 0], sizes = [1, 4, 2], strides = [1, 1, 1]} : vector<2x4x2xf32> to vector<1x4x2xf32>
    %3 = vector.shape_cast %2 : vector<1x4x2xf32> to vector<4x2xf32>
    %4 = vector.extract_strided_slice %1 {offsets = [1, 0, 0], sizes = [1, 4, 2], strides = [1, 1, 1]} : vector<2x4x2xf32> to vector<1x4x2xf32>
    %5 = vector.shape_cast %4 : vector<1x4x2xf32> to vector<4x2xf32>
    %6 = arith.addf %3, %5 : vector<4x2xf32>
    %7 = vector.shape_cast %6 : vector<4x2xf32> to vector<1x4x2xf32>
    %cst = arith.constant dense<0.000000e+00> : vector<1xf32>
    %8 = vector.multi_reduction <add>, %7, %cst [1, 2] : vector<1x4x2xf32> to vector<1xf32>
    %9 = vector.shape_cast %8 : vector<1xf32> to vector<1x1x1xf32>
    %10 = vector.extract %9[0, 0, 0] : f32 from vector<1x1x1xf32>
    %cst_3 = arith.constant 6.250000e-02 : f32
    %11 = arith.mulf %10, %cst_3 : f32
    %12 = vector.broadcast %11 : f32 to vector<2x4x2xf32>
    %13 = arith.subf %1, %12 : vector<2x4x2xf32>
    %14 = arith.mulf %13, %13 : vector<2x4x2xf32>
    %15 = vector.extract_strided_slice %14 {offsets = [0, 0, 0], sizes = [1, 4, 2], strides = [1, 1, 1]} : vector<2x4x2xf32> to vector<1x4x2xf32>
    %16 = vector.shape_cast %15 : vector<1x4x2xf32> to vector<4x2xf32>
    %17 = vector.extract_strided_slice %14 {offsets = [1, 0, 0], sizes = [1, 4, 2], strides = [1, 1, 1]} : vector<2x4x2xf32> to vector<1x4x2xf32>
    %18 = vector.shape_cast %17 : vector<1x4x2xf32> to vector<4x2xf32>
    %19 = arith.addf %16, %18 : vector<4x2xf32>
    %20 = vector.shape_cast %19 : vector<4x2xf32> to vector<1x4x2xf32>
    %cst_4 = arith.constant dense<0.000000e+00> : vector<1xf32>
    %21 = vector.multi_reduction <add>, %20, %cst_4 [1, 2] : vector<1x4x2xf32> to vector<1xf32>
    %22 = vector.shape_cast %21 : vector<1xf32> to vector<1x1x1xf32>
    %23 = vector.extract %22[0, 0, 0] : f32 from vector<1x1x1xf32>
    %cst_5 = arith.constant 6.250000e-02 : f32
    %24 = arith.mulf %23, %cst_5 : f32
    %cst_6 = arith.constant 9.99999974E-6 : f32
    %25 = arith.addf %24, %cst_6 : f32
    %26 = math.rsqrt %25 : f32
    %c0_7 = arith.constant 0 : index
    %27 = memref.load %arg1[%c0_7] : memref<2xf32, #tpu.memory_space<smem>>
    %28 = arith.mulf %27, %26 : f32
    %c0_8 = arith.constant 0 : index
    %29 = memref.load %arg2[%c0_8] : memref<2xf32, #tpu.memory_space<smem>>
    %30 = arith.mulf %11, %28 : f32
    %31 = arith.subf %29, %30 : f32
    %32 = vector.broadcast %28 : f32 to vector<2x4x2xf32>
    %33 = arith.mulf %1, %32 : vector<2x4x2xf32>
    %34 = vector.broadcast %31 : f32 to vector<2x4x2xf32>
    %35 = arith.addf %33, %34 : vector<2x4x2xf32>
    %cst_9 = arith.constant 0.000000e+00 : f32
    %36 = vector.broadcast %cst_9 : f32 to vector<2x4x2xf32>
    %37 = arith.maximumf %35, %36 : vector<2x4x2xf32>
    %38 = vector.extract_strided_slice %37 {offsets = [0, 0, 0], sizes = [2, 4, 1], strides = [1, 1, 1]} : vector<2x4x2xf32> to vector<2x4x1xf32>
    %c0_10 = arith.constant 0 : index
    %c0_11 = arith.constant 0 : index
    %39 = vector.load %arg3[%c0_10, %c0_11] : memref<2x4xf32, #tpu.memory_space<vmem>>, vector<1x4xf32>
    %40 = vector.shape_cast %39 : vector<1x4xf32> to vector<1x1x4xf32>
    %41 = vector.broadcast %38 : vector<2x4x1xf32> to vector<2x4x4xf32>
    %42 = vector.broadcast %40 : vector<1x1x4xf32> to vector<2x4x4xf32>
    %43 = arith.mulf %41, %42 : vector<2x4x4xf32>
    %44 = vector.extract_strided_slice %37 {offsets = [0, 0, 1], sizes = [2, 4, 1], strides = [1, 1, 1]} : vector<2x4x2xf32> to vector<2x4x1xf32>
    %c1 = arith.constant 1 : index
    %c0_12 = arith.constant 0 : index
    %45 = vector.load %arg3[%c1, %c0_12] : memref<2x4xf32, #tpu.memory_space<vmem>>, vector<1x4xf32>
    %46 = vector.shape_cast %45 : vector<1x4xf32> to vector<1x1x4xf32>
    %47 = vector.broadcast %44 : vector<2x4x1xf32> to vector<2x4x4xf32>
    %48 = vector.broadcast %46 : vector<1x1x4xf32> to vector<2x4x4xf32>
    %49 = arith.mulf %47, %48 : vector<2x4x4xf32>
    %50 = arith.addf %43, %49 : vector<2x4x4xf32>
    %c0_13 = arith.constant 0 : index
    %c0_14 = arith.constant 0 : index
    %51 = vector.load %arg4[%c0_13, %c0_14] : memref<1x4xf32, #tpu.memory_space<vmem>>, vector<1x4xf32>
    %52 = vector.shape_cast %51 : vector<1x4xf32> to vector<1x1x4xf32>
    %53 = vector.broadcast %52 : vector<1x1x4xf32> to vector<2x4x4xf32>
    %54 = arith.addf %50, %53 : vector<2x4x4xf32>
    %c0_15 = arith.constant 0 : index
    %c0_16 = arith.constant 0 : index
    %c0_17 = arith.constant 0 : index
    %c0_18 = arith.constant 0 : index
    %55 = vector.load %arg5[%c0_15, %c0_16, %c0_17, %c0_18] : memref<2x2x4x4xf32, #tpu.memory_space<vmem>>, vector<2x1x4x4xf32>
    %56 = vector.shape_cast %55 : vector<2x1x4x4xf32> to vector<2x4x4xf32>
    %57 = vector.shape_cast %54 : vector<2x4x4xf32> to vector<2x1x4x4xf32>
    tpu.vector_store %arg5[%c0_15, %c0_16, %c0_17, %c0_18], %57 {strides = array<i32>} : memref<2x2x4x4xf32, #tpu.memory_space<vmem>>, vector<2x1x4x4xf32>,
    %c0_19 = arith.constant 0 : index
    %c1_20 = arith.constant 1 : index
    %c0_21 = arith.constant 0 : index
    %c0_22 = arith.constant 0 : index
    %58 = vector.load %arg0[%c0_19, %c1_20, %c0_21, %c0_22] : memref<2x2x4x2xf32, #tpu.memory_space<vmem>>, vector<2x1x4x2xf32>
    %59 = vector.shape_cast %58 : vector<2x1x4x2xf32> to vector<2x4x2xf32>
    %60 = vector.extract_strided_slice %59 {offsets = [0, 0, 0], sizes = [1, 4, 2], strides = [1, 1, 1]} : vector<2x4x2xf32> to vector<1x4x2xf32>
    %61 = vector.shape_cast %60 : vector<1x4x2xf32> to vector<4x2xf32>
    %62 = vector.extract_strided_slice %59 {offsets = [1, 0, 0], sizes = [1, 4, 2], strides = [1, 1, 1]} : vector<2x4x2xf32> to vector<1x4x2xf32>
    %63 = vector.shape_cast %62 : vector<1x4x2xf32> to vector<4x2xf32>
    %64 = arith.addf %61, %63 : vector<4x2xf32>
    %65 = vector.shape_cast %64 : vector<4x2xf32> to vector<1x4x2xf32>
    %cst_23 = arith.constant dense<0.000000e+00> : vector<1xf32>
    %66 = vector.multi_reduction <add>, %65, %cst_23 [1, 2] : vector<1x4x2xf32> to vector<1xf32>
    %67 = vector.shape_cast %66 : vector<1xf32> to vector<1x1x1xf32>
    %68 = vector.extract %67[0, 0, 0] : f32 from vector<1x1x1xf32>
    %cst_24 = arith.constant 6.250000e-02 : f32
    %69 = arith.mulf %68, %cst_24 : f32
    %70 = vector.broadcast %69 : f32 to vector<2x4x2xf32>
    %71 = arith.subf %59, %70 : vector<2x4x2xf32>
    %72 = arith.mulf %71, %71 : vector<2x4x2xf32>
    %73 = vector.extract_strided_slice %72 {offsets = [0, 0, 0], sizes = [1, 4, 2], strides = [1, 1, 1]} : vector<2x4x2xf32> to vector<1x4x2xf32>
    %74 = vector.shape_cast %73 : vector<1x4x2xf32> to vector<4x2xf32>
    %75 = vector.extract_strided_slice %72 {offsets = [1, 0, 0], sizes = [1, 4, 2], strides = [1, 1, 1]} : vector<2x4x2xf32> to vector<1x4x2xf32>
    %76 = vector.shape_cast %75 : vector<1x4x2xf32> to vector<4x2xf32>
    %77 = arith.addf %74, %76 : vector<4x2xf32>
    %78 = vector.shape_cast %77 : vector<4x2xf32> to vector<1x4x2xf32>
    %cst_25 = arith.constant dense<0.000000e+00> : vector<1xf32>
    %79 = vector.multi_reduction <add>, %78, %cst_25 [1, 2] : vector<1x4x2xf32> to vector<1xf32>
    %80 = vector.shape_cast %79 : vector<1xf32> to vector<1x1x1xf32>
    %81 = vector.extract %80[0, 0, 0] : f32 from vector<1x1x1xf32>
    %cst_26 = arith.constant 6.250000e-02 : f32
    %82 = arith.mulf %81, %cst_26 : f32
    %cst_27 = arith.constant 9.99999974E-6 : f32
    %83 = arith.addf %82, %cst_27 : f32
    %84 = math.rsqrt %83 : f32
    %c1_28 = arith.constant 1 : index
    %85 = memref.load %arg1[%c1_28] : memref<2xf32, #tpu.memory_space<smem>>
    %86 = arith.mulf %85, %84 : f32
    %c1_29 = arith.constant 1 : index
    %87 = memref.load %arg2[%c1_29] : memref<2xf32, #tpu.memory_space<smem>>
    %88 = arith.mulf %69, %86 : f32
    %89 = arith.subf %87, %88 : f32
    %90 = vector.broadcast %86 : f32 to vector<2x4x2xf32>
    %91 = arith.mulf %59, %90 : vector<2x4x2xf32>
    %92 = vector.broadcast %89 : f32 to vector<2x4x2xf32>
    %93 = arith.addf %91, %92 : vector<2x4x2xf32>
    %cst_30 = arith.constant 0.000000e+00 : f32
    %94 = vector.broadcast %cst_30 : f32 to vector<2x4x2xf32>
    %95 = arith.maximumf %93, %94 : vector<2x4x2xf32>
    %96 = vector.extract_strided_slice %95 {offsets = [0, 0, 0], sizes = [2, 4, 1], strides = [1, 1, 1]} : vector<2x4x2xf32> to vector<2x4x1xf32>
    %c0_31 = arith.constant 0 : index
    %c0_32 = arith.constant 0 : index
    %97 = vector.load %arg3[%c0_31, %c0_32] : memref<2x4xf32, #tpu.memory_space<vmem>>, vector<1x4xf32>
    %98 = vector.shape_cast %97 : vector<1x4xf32> to vector<1x1x4xf32>
    %99 = vector.broadcast %96 : vector<2x4x1xf32> to vector<2x4x4xf32>
    %100 = vector.broadcast %98 : vector<1x1x4xf32> to vector<2x4x4xf32>
    %101 = arith.mulf %99, %100 : vector<2x4x4xf32>
    %102 = vector.extract_strided_slice %95 {offsets = [0, 0, 1], sizes = [2, 4, 1], strides = [1, 1, 1]} : vector<2x4x2xf32> to vector<2x4x1xf32>
    %c1_33 = arith.constant 1 : index
    %c0_34 = arith.constant 0 : index
    %103 = vector.load %arg3[%c1_33, %c0_34] : memref<2x4xf32, #tpu.memory_space<vmem>>, vector<1x4xf32>
    %104 = vector.shape_cast %103 : vector<1x4xf32> to vector<1x1x4xf32>
    %105 = vector.broadcast %102 : vector<2x4x1xf32> to vector<2x4x4xf32>
    %106 = vector.broadcast %104 : vector<1x1x4xf32> to vector<2x4x4xf32>
    %107 = arith.mulf %105, %106 : vector<2x4x4xf32>
    %108 = arith.addf %101, %107 : vector<2x4x4xf32>
    %c0_35 = arith.constant 0 : index
    %c0_36 = arith.constant 0 : index
    %109 = vector.load %arg4[%c0_35, %c0_36] : memref<1x4xf32, #tpu.memory_space<vmem>>, vector<1x4xf32>
    %110 = vector.shape_cast %109 : vector<1x4xf32> to vector<1x1x4xf32>
    %111 = vector.broadcast %110 : vector<1x1x4xf32> to vector<2x4x4xf32>
    %112 = arith.addf %108, %111 : vector<2x4x4xf32>
    %c0_37 = arith.constant 0 : index
    %c1_38 = arith.constant 1 : index
    %c0_39 = arith.constant 0 : index
    %c0_40 = arith.constant 0 : index
    %113 = vector.load %arg5[%c0_37, %c1_38, %c0_39, %c0_40] : memref<2x2x4x4xf32, #tpu.memory_space<vmem>>, vector<2x1x4x4xf32>
    %114 = vector.shape_cast %113 : vector<2x1x4x4xf32> to vector<2x4x4xf32>
    %115 = vector.shape_cast %112 : vector<2x4x4xf32> to vector<2x1x4x4xf32>
    tpu.vector_store %arg5[%c0_37, %c1_38, %c0_39, %c0_40], %115 {strides = array<i32>} : memref<2x2x4x4xf32, #tpu.memory_space<vmem>>, vector<2x1x4x4xf32>,
    return
  }
}

</mosaic_0001>

<llo_original>
// kernel: tpu_custom_call.1
$region0: #{tpu_custom_call.1}
  #allocation0 [shape = 'u32[]', space=smem, size = 0x4, offset = 0x4, fixed_abs, tag = 'smem constant byte address 0x4 - core index']
  #allocation1 [shape = 'u32[144,128]{1,0:T(1,128)}', space=vmem, size = 0x12000, scoped, tag = 'internal scratch']
  %s0 = inlined_call_operand.vmem [shape: f32[2,2,4,2], index: 0, kind: input, shape index: {}]
  %s1 = inlined_call_operand.vmem [shape: f32[2], index: 1, kind: input, shape index: {}]
  %s2 = inlined_call_operand.vmem [shape: f32[2], index: 2, kind: input, shape index: {}]
  %s3 = inlined_call_operand.vmem [shape: f32[2,4], index: 3, kind: input, shape index: {}]
  %s4 = inlined_call_operand.vmem [shape: f32[1,4], index: 4, kind: input, shape index: {}]
  %s5 = inlined_call_operand.hbm [shape: f32[2,2,4,4], index: 5, kind: output, shape index: {}]
  %s6 = sld [smem:[#allocation0]]
  $region38: #{tpu_custom_call.1} parent=0
    _
  %s8 = ssub.s32 1, %s6
  %s9 = scalar_select 0, %s8, %s6
  $region1: #{tpu_custom_call.1} parent=0
    #allocation2 [shape = 'u8[512]{0}', space=smem, size = 0x200, scoped, tag = 'input window, operand 1, single buffered']
    #allocation3 [shape = 's32[1]{0}', space=sflag, size = 0x4, scoped, tag = 'scoped memory for tpu_custom_call.1']
    #allocation4 [shape = 's32[1]{0}', space=sflag, size = 0x4, scoped, tag = 'scoped memory for tpu_custom_call.1']
    #allocation5 [shape = 'u8[512]{0}', space=smem, size = 0x200, scoped, tag = 'input window, operand 2, single buffered']
    #allocation6 [shape = 's32[1]{0}', space=sflag, size = 0x4, scoped, tag = 'scoped memory for tpu_custom_call.1']
    #allocation7 [shape = 'u8[8192]{0}', space=vmem, size = 0x2000, scoped, tag = 'output window, operand 0, single buffered']
    %10 = vsyncpa [#allocation4], 0
    %11 = vsyncpa [#allocation6], 0
    %12 = vsyncpa [#allocation3], 0
    // Predicated region
    $region2: #{tpu_custom_call.1} parent=1 // pred_check
      _
    $region3: #{tpu_custom_call.1} parent=1 // pred_check_branch
      %14 = sbr.rel (0) target = $region5
    $region4: #{tpu_custom_call.1} parent=1 // pred_region
      _
    $region5: #{tpu_custom_call.1} parent=1 // pred_fallthru
      _
    // Predicated region
    $region6: #{tpu_custom_call.1} parent=1 // pred_check
      _
    $region7: #{tpu_custom_call.1} parent=1 // pred_check_branch
      %16 = sbr.rel (0) target = $region9
    $region8: #{tpu_custom_call.1} parent=1 // pred_region
      %s18 = ssub.s32 16, 16
      %19 = vsyncadd [#allocation4], %s18
      %s21 = sshll.u32 %s1, 4
      %s22 = int_to_ptr.vmem [resolvable:$true] %s21
      %24 = dma.vmem_to_smem %s22, 16, [#allocation2], [#allocation4]
    $region9: #{tpu_custom_call.1} parent=1 // pred_fallthru
      _
    // Predicated region
    $region10: #{tpu_custom_call.1} parent=1 // pred_check
      _
    $region11: #{tpu_custom_call.1} parent=1 // pred_check_branch
      %26 = sbr.rel (0) target = $region13
    $region12: #{tpu_custom_call.1} parent=1 // pred_region
      %s28 = ssub.s32 16, 16
      %29 = vsyncadd [#allocation6], %s28
      %s31 = sshll.u32 %s2, 4
      %s32 = int_to_ptr.vmem [resolvable:$true] %s31
      %34 = dma.vmem_to_smem %s32, 16, [#allocation5], [#allocation6]
    $region13: #{tpu_custom_call.1} parent=1 // pred_fallthru
      _
    // Predicated region
    $region14: #{tpu_custom_call.1} parent=1 // pred_check
      _
    $region15: #{tpu_custom_call.1} parent=1 // pred_check_branch
      %36 = sbr.rel (0) target = $region17
    $region16: #{tpu_custom_call.1} parent=1 // pred_region
      _
    $region17: #{tpu_custom_call.1} parent=1 // pred_fallthru
      _
    // Predicated region
    $region18: #{tpu_custom_call.1} parent=1 // pred_check
      _
    $region19: #{tpu_custom_call.1} parent=1 // pred_check_branch
      %38 = sbr.rel (0) target = $region21
    $region20: #{tpu_custom_call.1} parent=1 // pred_region
      _
    $region21: #{tpu_custom_call.1} parent=1 // pred_fallthru
      _
    // Predicated region
    $region22: #{tpu_custom_call.1} parent=1 // pred_check
      _
    $region23: #{tpu_custom_call.1} parent=1 // pred_check_branch
      %40 = sbr.rel (0) target = $region25
    $region24: #{tpu_custom_call.1} parent=1 // pred_region
      %41 = dma.done [#allocation4], 16
    $region25: #{tpu_custom_call.1} parent=1 // pred_fallthru
      _
    // Predicated region
    $region26: #{tpu_custom_call.1} parent=1 // pred_check
      _
    $region27: #{tpu_custom_call.1} parent=1 // pred_check_branch
      %43 = sbr.rel (0) target = $region29
    $region28: #{tpu_custom_call.1} parent=1 // pred_region
      %44 = dma.done [#allocation6], 16
    $region29: #{tpu_custom_call.1} parent=1 // pred_fallthru
      _
    %45 = sfence
    %v46 = vld [vmem:[%s0] sm:$0xf]
    %v47 = vld [vmem:[%s0 + $0x8] sm:$0xf]
    %v48 = vadd.f32 %v46, %v47
    %vm49 = vcmask 11264
    %v50 = vsel %vm49, %v48, 0.0
    %51 = vadd.xlane.f32.xlu0 %v50
    %v52 = vpop.xlane.xlu0 %51
    %v53 = vrot.slane %v52, 4
    %v54 = vadd.f32 %v52, %v53
    %v55 = vrot.slane %v54, 2
    %v56 = vadd.f32 %v54, %v55
    %v57 = vrot.slane %v56, 1
    %v58 = vadd.f32 %v56, %v57
    %s59 = vtos %v58
    %s60 = smul.f32 %s59, 0.0625
    %v61 = vstv %s60
    %v62 = vsub.f32 %v46, %v61
    %v63 = vsub.f32 %v47, %v61
    %v64 = vmul.f32 %v62, %v62
    %v65 = vmul.f32 %v63, %v63
    %v66 = vadd.f32 %v64, %v65
    %v67 = vsel %vm49, %v66, 0.0
    %68 = vadd.xlane.f32.xlu0 %v67
    %v69 = vpop.xlane.xlu0 %68
    %v70 = vrot.slane %v69, 4
    %v71 = vadd.f32 %v69, %v70
    %v72 = vrot.slane %v71, 2
    %v73 = vadd.f32 %v71, %v72
    %v74 = vrot.slane %v73, 1
    %v75 = vadd.f32 %v73, %v74
    %s76 = vtos %v75
    %s77 = smul.f32 %s76, 0.0625
    %s78 = sadd.f32 %s77, 1e-05
    %v79 = vstv %s78
    %v80 = vrsqrt.pop %v79
    %s81 = vtos %v80
    %s82 = sld [smem:[#allocation2]]
    %s83 = smul.f32 %s82, %s81
    %s84 = sld [smem:[#allocation5]]
    %s85 = smul.f32 %s60, %s83
    %s86 = ssub.f32 %s84, %s85
    %v87 = vstv %s83
    %v88 = vmul.f32 %v46, %v87
    %v89 = vmul.f32 %v47, %v87
    %v90 = vstv %s86
    %v91 = vadd.f32 %v88, %v90
    %v92 = vadd.f32 %v89, %v90
    %v93 = vmax.f32 %v91, 0.0
    %v94 = vmax.f32 %v92, 0.0
    %v95 = vld [vmem:[%s3] sm:$0x1]
    %97 = vset.pattern.permute.xlu0 0
    %98 = vperm.xlu0 %97, %v93
    %v99 = vpop.permute.xlu0 %98
    %102 = vset.pattern.permute.xlu0 0
    %103 = vperm.xlu0 %102, %v94
    %v104 = vpop.permute.xlu0 %103
    %v106 = vlaneseq
    %v107 = vshrl.u32 %v106, 7
    %v108 = vsub.s32 0, %v107
    %v109 = vrot.slane %v95, %v108
    %v110 = vmul.f32 %v99, %v109
    %v111 = vmul.f32 %v104, %v109
    %v112 = vld [vmem:[%s3 + $0x1] sm:$0x1]
    %113 = vset.pattern.permute.xlu0 1
    %114 = vperm.xlu0 %113, %v93
    %v115 = vpop.permute.xlu0 %114
    %117 = vset.pattern.permute.xlu0 1
    %118 = vperm.xlu0 %117, %v94
    %v119 = vpop.permute.xlu0 %118
    %v121 = vlaneseq
    %v122 = vshrl.u32 %v121, 7
    %v123 = vsub.s32 0, %v122
    %v124 = vrot.slane %v112, %v123
    %v125 = vmul.f32 %v115, %v124
    %v126 = vmul.f32 %v119, %v124
    %v127 = vadd.f32 %v110, %v125
    %v128 = vadd.f32 %v111, %v126
    %v129 = vld [vmem:[%s4] sm:$0x1]
    %v131 = vlaneseq
    %v132 = vshrl.u32 %v131, 7
    %v133 = vsub.s32 0, %v132
    %v134 = vrot.slane %v129, %v133
    %v136 = vadd.f32 %v127, %v134
    %v137 = vadd.f32 %v128, %v134
    %vm138 = vcmask 27648
    %139 = vst.msk [vmem:[#allocation7] sm:$0xf] %vm138, %v136
    %140 = vst.msk [vmem:[#allocation7 + $0x8] sm:$0xf] %vm138, %v137
    %s141 = scalar_lea.vmem %s0, 4
    %v142 = vld [vmem:[%s141] sm:$0xf]
    %v143 = vld [vmem:[%s141 + $0x8] sm:$0xf]
    %v144 = vadd.f32 %v142, %v143
    %v145 = vsel %vm49, %v144, 0.0
    %146 = vadd.xlane.f32.xlu0 %v145
    %v147 = vpop.xlane.xlu0 %146
    %v148 = vrot.slane %v147, 4
    %v149 = vadd.f32 %v147, %v148
    %v150 = vrot.slane %v149, 2
    %v151 = vadd.f32 %v149, %v150
    %v152 = vrot.slane %v151, 1
    %v153 = vadd.f32 %v151, %v152
    %s154 = vtos %v153
    %s155 = smul.f32 %s154, 0.0625
    %v156 = vstv %s155
    %v157 = vsub.f32 %v142, %v156
    %v158 = vsub.f32 %v143, %v156
    %v159 = vmul.f32 %v157, %v157
    %v160 = vmul.f32 %v158, %v158
    %v161 = vadd.f32 %v159, %v160
    %v162 = vsel %vm49, %v161, 0.0
    %163 = vadd.xlane.f32.xlu0 %v162
    %v164 = vpop.xlane.xlu0 %163
    %v165 = vrot.slane %v164, 4
    %v166 = vadd.f32 %v164, %v165
    %v167 = vrot.slane %v166, 2
    %v168 = vadd.f32 %v166, %v167
    %v169 = vrot.slane %v168, 1
    %v170 = vadd.f32 %v168, %v169
    %s171 = vtos %v170
    %s172 = smul.f32 %s171, 0.0625
    %s173 = sadd.f32 %s172, 1e-05
    %v174 = vstv %s173
    %v175 = vrsqrt.pop %v174
    %s176 = vtos %v175
    %s177 = sld [smem:[#allocation2 + $0x1]]
    %s178 = smul.f32 %s177, %s176
    %s179 = sld [smem:[#allocation5 + $0x1]]
    %s180 = smul.f32 %s155, %s178
    %s181 = ssub.f32 %s179, %s180
    %v182 = vstv %s178
    %v183 = vmul.f32 %v142, %v182
    %v184 = vmul.f32 %v143, %v182
    %v185 = vstv %s181
    %v186 = vadd.f32 %v183, %v185
    %v187 = vadd.f32 %v184, %v185
    %v188 = vmax.f32 %v186, 0.0
    %v189 = vmax.f32 %v187, 0.0
    %v190 = vld [vmem:[%s3] sm:$0x1]
    %192 = vset.pattern.permute.xlu0 0
    %193 = vperm.xlu0 %192, %v188
    %v194 = vpop.permute.xlu0 %193
    %197 = vset.pattern.permute.xlu0 0
    %198 = vperm.xlu0 %197, %v189
    %v199 = vpop.permute.xlu0 %198
    %v201 = vlaneseq
    %v202 = vshrl.u32 %v201, 7
    %v203 = vsub.s32 0, %v202
    %v204 = vrot.slane %v190, %v203
    %v205 = vmul.f32 %v194, %v204
    %v206 = vmul.f32 %v199, %v204
    %v207 = vld [vmem:[%s3 + $0x1] sm:$0x1]
    %208 = vset.pattern.permute.xlu0 1
    %209 = vperm.xlu0 %208, %v188
    %v210 = vpop.permute.xlu0 %209
    %212 = vset.pattern.permute.xlu0 1
    %213 = vperm.xlu0 %212, %v189
    %v214 = vpop.permute.xlu0 %213
    %v216 = vlaneseq
    %v217 = vshrl.u32 %v216, 7
    %v218 = vsub.s32 0, %v217
    %v219 = vrot.slane %v207, %v218
    %v220 = vmul.f32 %v210, %v219
    %v221 = vmul.f32 %v214, %v219
    %v222 = vadd.f32 %v205, %v220
    %v223 = vadd.f32 %v206, %v221
    %v224 = vld [vmem:[%s4] sm:$0x1]
    %v226 = vlaneseq
    %v227 = vshrl.u32 %v226, 7
    %v228 = vsub.s32 0, %v227
    %v229 = vrot.slane %v224, %v228
    %v231 = vadd.f32 %v222, %v229
    %v232 = vadd.f32 %v223, %v229
    %s233 = scalar_lea.vmem [#allocation7], 4
    %234 = vst.msk [vmem:[%s233] sm:$0xf] %vm138, %v231
    %235 = vst.msk [vmem:[%s233 + $0x8] sm:$0xf] %vm138, %v232
    // Predicated region
    $region30: #{tpu_custom_call.1} parent=1 // pred_check
      _
    $region31: #{tpu_custom_call.1} parent=1 // pred_check_branch
      %237 = sbr.rel (0) target = $region33
    $region32: #{tpu_custom_call.1} parent=1 // pred_region
      %s239 = ssub.s32 256, 256
      %240 = vsyncadd [#allocation3], %s239
      %s241 = sshll.u32 [#allocation7], 4
      %s242 = int_to_ptr.vmem [resolvable:$true] %s241
      %247 = dma.vmem_to_hbm [thread:$0]  %s242, 256, %s5, [#allocation3], 64, 64, 4
    $region33: #{tpu_custom_call.1} parent=1 // pred_fallthru
      _
    // Predicated region
    $region34: #{tpu_custom_call.1} parent=1 // pred_check
      _
    $region35: #{tpu_custom_call.1} parent=1 // pred_check_branch
      %249 = sbr.rel (0) target = $region37
    $region36: #{tpu_custom_call.1} parent=1 // pred_region
      %250 = dma.done [#allocation3], 256
    $region37: #{tpu_custom_call.1} parent=1 // pred_fallthru
      _
    %251 = vsyncpa [#allocation3], 1
    %252 = vsyncpa [#allocation4], 1
    %253 = vsyncpa [#allocation6], 1

</llo_original>
